<compile_context>
chip_gen: v7x
topology: tpu7x:2x2x1
jax: 0.10.0
libtpu: 0.0.40
codegen_flags: <defaults>
</compile_context>

<pallas_src>
import functools
import math

import jax
import jax.numpy as jnp
from jax.experimental import pallas as pl
from jax.experimental.pallas import tpu as pltpu


# ---------------------------------------------------------------------------
# Kernel 1: gating MLP  (N, F) -> softmax expert weights (N, num_experts)
# ---------------------------------------------------------------------------
def _gating_kernel(xg_ref, w0_ref, b0_ref, w1_ref, b1_ref, w2_ref, b2_ref, out_ref):
    # TODO(synk): training-mode nn.Dropout(p=0.7) between gating layers omitted
    # (inference semantics -> identity).
    def elu(h):  # exp only evaluated on the non-positive branch (no inf)
        return jnp.where(h > 0, h, jnp.exp(jnp.minimum(h, 0.0)) - 1.0)

    x = xg_ref[...].astype(jnp.bfloat16)
    h = jnp.dot(x, w0_ref[...].astype(jnp.bfloat16),
                preferred_element_type=jnp.float32) + b0_ref[...]
    h = elu(h)
    h = jnp.dot(h.astype(jnp.bfloat16), w1_ref[...].astype(jnp.bfloat16),
                preferred_element_type=jnp.float32) + b1_ref[...]
    h = elu(h)
    h = jnp.dot(h.astype(jnp.bfloat16), w2_ref[...].astype(jnp.bfloat16),
                preferred_element_type=jnp.float32) + b2_ref[...]
    m = jnp.max(h, axis=-1, keepdims=True)              # softmax over experts (dim=1)
    e = jnp.exp(h - m)
    out_ref[...] = e / jnp.sum(e, axis=-1, keepdims=True)


def gating_mlp(xg, w0, b0, w1, b1, w2, b2):
    # TODO(synk): for production feature sizes (tens of thousands), K-tile the
    # (N,F)x(F,256) matmul with a reduction grid axis so w0 is not fully
    # resident in VMEM (matters on v7x's smaller VMEM).
    n = xg.shape[0]
    num_experts = w2.shape[1]
    return pl.pallas_call(
        _gating_kernel,
        out_shape=jax.ShapeDtypeStruct((n, num_experts), jnp.float32),
    )(xg, w0, b0, w1, b1, w2, b2)


# ---------------------------------------------------------------------------
# Kernel 2 (fused): expert-mixed graph conv + 3x3 conv (+BN) + residual + PReLU
# Lane layout: last axis is the flattened (T*V) dimension.
# ---------------------------------------------------------------------------
def _fused_kernel(*refs, num_experts, KT, KV, V, TV, identity_res):
    if identity_res:
        (gate_ref, alpha_ref, x_ref, abd_ref, wt_ref, mask_ref,
         tsc_ref, tbi_ref, out_ref) = refs
        wr_ref = rsc_ref = rbi_ref = None
    else:
        (gate_ref, alpha_ref, x_ref, abd_ref, wt_ref, mask_ref,
         tsc_ref, tbi_ref, wr_ref, rsc_ref, rbi_ref, out_ref) = refs

    n = pl.program_id(0)
    x = x_ref[0]                                         # (C_in, T*V) f32

    # --- mixture-of-experts adjacency, block-diagonal over T (VPU) ----------
    asbd = gate_ref[n, 0] * abd_ref[0]                   # (T*V, T*V) f32
    for e in range(1, num_experts):
        asbd = asbd + gate_ref[n, e] * abd_ref[e]

    # --- graph convolution: single lane-dense matmul (MXU, bf16 x bf16 -> f32)
    xg = jnp.dot(x.astype(jnp.bfloat16), asbd.astype(jnp.bfloat16),
                 preferred_element_type=jnp.float32)     # (C_in, T*V)

    # --- 3x3 conv: KT*KV lane-shifted (roll on XLU) + masked matmuls ---------
    # TODO(synk): nn.Dropout inside the tcn Sequential omitted (inference).
    c_out = out_ref.shape[1]
    acc = jnp.zeros((c_out, TV), jnp.float32)
    tap = 0
    for kt in range(KT):
        dt = kt - (KT - 1) // 2
        for kv in range(KV):
            dv = kv - (KV - 1) // 2
            shift = (-(dt * V + dv)) % TV
            shifted = pltpu.roll(xg, shift=shift, axis=1) if shift else xg
            if dt != 0 or dv != 0:                       # zero wrapped/padded lanes
                shifted = shifted * mask_ref[tap:tap + 1, :]
            acc = acc + jnp.dot(wt_ref[tap].astype(jnp.bfloat16),
                                shifted.astype(jnp.bfloat16),
                                preferred_element_type=jnp.float32)
            tap += 1
    y = acc * tsc_ref[...] + tbi_ref[...]                # conv bias + BN folded

    # --- residual branch -----------------------------------------------------
    if identity_res:
        y = y + x
    else:
        res = jnp.dot(wr_ref[...].astype(jnp.bfloat16), x.astype(jnp.bfloat16),
                      preferred_element_type=jnp.float32)
        y = y + res * rsc_ref[...] + rbi_ref[...]

    alpha = alpha_ref[0]
    out_ref[0] = jnp.where(y >= 0.0, y, alpha * y)       # PReLU (lane-dense store)


def _shift_masks(T, V, KT, KV):
    """Validity mask for each (kt,kv) tap over the flattened (T*V) lane axis."""
    idx = jnp.arange(T * V, dtype=jnp.int32)
    tt, vv = idx // V, idx % V
    rows = []
    for kt in range(KT):
        dt = kt - (KT - 1) // 2
        for kv in range(KV):
            dv = kv - (KV - 1) // 2
            ok = (tt + dt >= 0) & (tt + dt < T) & (vv + dv >= 0) & (vv + dv < V)
            rows.append(ok.astype(jnp.float32))
    return jnp.stack(rows, axis=0)                       # (KT*KV, T*V)


# ---------------------------------------------------------------------------
# Full ST_GCNN_layer forward
# ---------------------------------------------------------------------------
def st_gcnn_forward(x, params, kernel_size, stride=1):
    assert stride == 1, "residual shape constraint requires stride == 1"
    N, C_in, T, V = x.shape
    KT, KV = kernel_size
    TV = T * V
    x = x.astype(jnp.float32)

    # 1) gating MLP on the flattened sample (matches x.reshape(-1, feature_size))
    gate = gating_mlp(x.reshape(N, -1), params['w0'], params['b0'],
                      params['w1'], params['b1'], params['w2'], params['b2'])

    # 2) per-expert block-diagonal adjacency (T*V, T*V), built once in the wrapper
    A = params['A'].astype(jnp.float32)                  # (E, T, V, V)
    E = A.shape[0]
    eyeT = jnp.eye(T, dtype=jnp.float32)
    A_bd = jnp.einsum('etvw,ts->etvsw', A, eyeT).reshape(E, TV, TV)

    # 3) fold BatchNorm (eval) + conv bias into per-channel scale/bias
    eps = 1e-5
    C_out = params['tcn_w'].shape[0]
    t_scale = params['t_gamma'] / jnp.sqrt(params['t_var'] + eps)
    t_bias = t_scale * params['tcn_b'] + params['t_beta'] - t_scale * params['t_mean']
    wt_taps = jnp.transpose(params['tcn_w'], (2, 3, 0, 1)).reshape(KT * KV, C_out, C_in)
    masks = _shift_masks(T, V, KT, KV)

    identity_res = (C_in == C_out)

    inputs = [gate, params['prelu_alpha'], x.reshape(N, C_in, TV), A_bd,
              wt_taps, masks, t_scale.reshape(C_out, 1), t_bias.reshape(C_out, 1)]
    in_specs = [
        pl.BlockSpec(memory_space=pltpu.MemorySpace.SMEM),            # gate (N, E)
        pl.BlockSpec(memory_space=pltpu.MemorySpace.SMEM),            # PReLU alpha
        pl.BlockSpec((1, C_in, TV), lambda n: (n, 0, 0)),             # x, lanes = T*V
        pl.BlockSpec((E, TV, TV), lambda n: (0, 0, 0)),               # block-diag A
        pl.BlockSpec((KT * KV, C_out, C_in), lambda n: (0, 0, 0)),    # conv taps
        pl.BlockSpec((KT * KV, TV), lambda n: (0, 0)),                # shift masks
        pl.BlockSpec((C_out, 1), lambda n: (0, 0)),                   # folded BN scale
        pl.BlockSpec((C_out, 1), lambda n: (0, 0)),                   # folded BN bias
    ]
    if not identity_res:
        r_scale = params['r_gamma'] / jnp.sqrt(params['r_var'] + eps)
        r_bias = r_scale * params['res_b'] + params['r_beta'] - r_scale * params['r_mean']
        inputs += [params['res_w'], r_scale.reshape(C_out, 1), r_bias.reshape(C_out, 1)]
        in_specs += [
            pl.BlockSpec((C_out, C_in), lambda n: (0, 0)),            # 1x1 residual conv
            pl.BlockSpec((C_out, 1), lambda n: (0, 0)),
            pl.BlockSpec((C_out, 1), lambda n: (0, 0)),
        ]

    kernel = functools.partial(_fused_kernel, num_experts=E, KT=KT, KV=KV, V=V,
                               TV=TV, identity_res=identity_res)
    out = pl.pallas_call(
        kernel,
        grid=(N,),
        in_specs=in_specs,
        out_specs=pl.BlockSpec((1, C_out, TV), lambda n: (n, 0, 0)),
        out_shape=jax.ShapeDtypeStruct((N, C_out, TV), jnp.float32),
        compiler_params=pltpu.CompilerParams(dimension_semantics=("parallel",)),
    )(*inputs)
    return out.reshape(N, C_out, T, V)                   # back to (N, C_out, T, V)


# ---------------------------------------------------------------------------
# Deterministic parameter construction (shapes from the module's __init__)
# ---------------------------------------------------------------------------
def init_params(key, in_channels, out_channels, kernel_size, time_dim, joints_dim):
    hidden, experts = 256, 4
    KT, KV = kernel_size
    F = in_channels * time_dim * joints_dim
    ks = jax.random.split(key, 19)

    def u(k, shape, s):
        return jax.random.uniform(k, shape, jnp.float32, -s, s)

    p = {}
    p['w0'] = u(ks[0], (F, hidden), 1.0 / math.sqrt(F))
    p['b0'] = u(ks[1], (1, hidden), 1.0 / math.sqrt(F))
    p['w1'] = u(ks[2], (hidden, hidden), 1.0 / math.sqrt(hidden))
    p['b1'] = u(ks[3], (1, hidden), 1.0 / math.sqrt(hidden))
    p['w2'] = u(ks[4], (hidden, experts), 1.0 / math.sqrt(hidden))
    p['b2'] = u(ks[5], (1, experts), 1.0 / math.sqrt(hidden))
    p['A'] = u(ks[6], (experts, time_dim, joints_dim, joints_dim),
               1.0 / math.sqrt(joints_dim))
    fan = in_channels * KT * KV
    p['tcn_w'] = u(ks[7], (out_channels, in_channels, KT, KV), 1.0 / math.sqrt(fan))
    p['tcn_b'] = u(ks[8], (out_channels,), 1.0 / math.sqrt(fan))
    p['t_gamma'] = 1.0 + 0.1 * u(ks[9], (out_channels,), 1.0)
    p['t_beta'] = 0.1 * u(ks[10], (out_channels,), 1.0)
    p['t_mean'] = 0.1 * u(ks[11], (out_channels,), 1.0)
    p['t_var'] = 1.0 + 0.1 * jax.random.uniform(ks[12], (out_channels,), jnp.float32)
    p['res_w'] = u(ks[13], (out_channels, in_channels), 1.0 / math.sqrt(in_channels))
    p['res_b'] = u(ks[14], (out_channels,), 1.0 / math.sqrt(in_channels))
    p['r_gamma'] = 1.0 + 0.1 * u(ks[15], (out_channels,), 1.0)
    p['r_beta'] = 0.1 * u(ks[16], (out_channels,), 1.0)
    p['r_mean'] = 0.1 * u(ks[17], (out_channels,), 1.0)
    p['r_var'] = 1.0 + 0.1 * jax.random.uniform(ks[18], (out_channels,), jnp.float32)
    p['prelu_alpha'] = jnp.full((1,), 0.25, jnp.float32)
    return p


# ---------------------------------------------------------------------------
# Pure-JAX reference (same inference semantics, full f32 precision)
# ---------------------------------------------------------------------------
def reference_forward(x, params, kernel_size):
    HI = jax.lax.Precision.HIGHEST
    N, C_in, T, V = x.shape
    KT, KV = kernel_size
    x = x.astype(jnp.float32)
    xg = x.reshape(N, -1)
    h = jax.nn.elu(jnp.dot(xg, params['w0'], precision=HI) + params['b0'])
    h = jax.nn.elu(jnp.dot(h, params['w1'], precision=HI) + params['b1'])
    h = jnp.dot(h, params['w2'], precision=HI) + params['b2']
    gate = jax.nn.softmax(h, axis=1)
    AS = jnp.einsum('ne,etvw->ntvw', gate, params['A'], precision=HI)
    xg2 = jnp.einsum('nctv,ntvw->nctw', x, AS, precision=HI)

    pt, pv = (KT - 1) // 2, (KV - 1) // 2
    xp = jnp.pad(xg2, ((0, 0), (0, 0), (pt, pt), (pv, pv)))
    W = params['tcn_w']
    C_out = W.shape[0]
    y = jnp.zeros((N, C_out, T, V), jnp.float32)
    for kt in range(KT):
        for kv in range(KV):
            y = y + jnp.einsum('oc,nctv->notv', W[:, :, kt, kv],
                               xp[:, :, kt:kt + T, kv:kv + V], precision=HI)
    eps = 1e-5
    y = y + params['tcn_b'][None, :, None, None]
    y = (y - params['t_mean'][None, :, None, None]) \
        / jnp.sqrt(params['t_var'] + eps)[None, :, None, None]
    y = y * params['t_gamma'][None, :, None, None] + params['t_beta'][None, :, None, None]
    if C_in == C_out:
        res = x
    else:
        res = jnp.einsum('oc,nctv->notv', params['res_w'], x, precision=HI)
        res = res + params['res_b'][None, :, None, None]
        res = (res - params['r_mean'][None, :, None, None]) \
            / jnp.sqrt(params['r_var'] + eps)[None, :, None, None]
        res = res * params['r_gamma'][None, :, None, None] \
            + params['r_beta'][None, :, None, None]
    y = y + res
    a = params['prelu_alpha'][0]
    return jnp.where(y >= 0, y, a * y)


if __name__ == "__main__":
    T, V = 8, 16                      # T*V = 128 -> lane-dense
    kernel_size = (3, 3)
    key = jax.random.PRNGKey(0)

    # (N, C_in, C_out): first exercises the 1x1-conv residual, second the identity residual
    for cfg, (N, C_in, C_out) in enumerate([(2, 4, 8), (2, 4, 4)]):
        kx, kp, key = jax.random.split(key, 3)
        x = jax.random.normal(kx, (N, C_in, T, V), jnp.float32)
        params = init_params(kp, C_in, C_out, kernel_size, T, V)

        out = jax.block_until_ready(st_gcnn_forward(x, params, kernel_size, stride=1))
        assert out.shape == (N, C_out, T, V)

        ref = reference_forward(x, params, kernel_size)
        if not jnp.allclose(out, ref, rtol=3e-2, atol=3e-2):
            raise AssertionError(
                f"config {cfg}: Pallas output mismatch vs reference, max abs err = "
                f"{float(jnp.max(jnp.abs(out - ref)))}")
    print("KERNEL_OK")
</pallas_src>

<mosaic_0001>
module attributes {stable_mosaic.version = 11 : i64} {
  func.func @_gating_kernel(%arg0: memref<2x512xf32, #tpu.memory_space<vmem>>, %arg1: memref<512x256xf32, #tpu.memory_space<vmem>>, %arg2: memref<1x256xf32, #tpu.memory_space<vmem>>, %arg3: memref<256x256xf32, #tpu.memory_space<vmem>>, %arg4: memref<1x256xf32, #tpu.memory_space<vmem>>, %arg5: memref<256x4xf32, #tpu.memory_space<vmem>>, %arg6: memref<1x4xf32, #tpu.memory_space<vmem>>, %arg7: memref<2x4xf32, #tpu.memory_space<vmem>>) attributes {dimension_semantics = [], scalar_prefetch = 0 : i64, scratch_operands = 0 : i64, tpu.core_type = #tpu.core_type<tc>} {
    %c0 = arith.constant 0 : index
    %c0_0 = arith.constant 0 : index
    %0 = vector.load %arg0[%c0, %c0_0] : memref<2x512xf32, #tpu.memory_space<vmem>>, vector<2x512xf32>
    %1 = arith.truncf %0 : vector<2x512xf32> to vector<2x512xbf16>
    %c0_1 = arith.constant 0 : index
    %c0_2 = arith.constant 0 : index
    %2 = vector.load %arg1[%c0_1, %c0_2] : memref<512x256xf32, #tpu.memory_space<vmem>>, vector<512x256xf32>
    %3 = arith.truncf %2 : vector<512x256xf32> to vector<512x256xbf16>
    %cst = arith.constant dense<0.000000e+00> : vector<2x256xf32>
    %4 = tpu.matmul %1, %3, %cst {dimension_numbers = #tpu.dot_dimension_numbers<[1], [0], [0], [1], [0, 0, 1, 1], [], []>} : vector<2x512xbf16>, vector<512x256xbf16>, vector<2x256xf32> -> vector<2x256xf32>
    %c0_3 = arith.constant 0 : index
    %c0_4 = arith.constant 0 : index
    %5 = vector.load %arg2[%c0_3, %c0_4] : memref<1x256xf32, #tpu.memory_space<vmem>>, vector<1x256xf32>
    %6 = vector.broadcast %5 : vector<1x256xf32> to vector<2x256xf32>
    %7 = arith.addf %4, %6 : vector<2x256xf32>
    %cst_5 = arith.constant 0.000000e+00 : f32
    %8 = vector.broadcast %cst_5 : f32 to vector<2x256xf32>
    %9 = arith.cmpf ogt, %7, %8 : vector<2x256xf32>
    %cst_6 = arith.constant 0.000000e+00 : f32
    %10 = vector.broadcast %cst_6 : f32 to vector<2x256xf32>
    %11 = arith.minimumf %7, %10 : vector<2x256xf32>
    %12 = math.exp %11 : vector<2x256xf32>
    %cst_7 = arith.constant 1.000000e+00 : f32
    %13 = vector.broadcast %cst_7 : f32 to vector<2x256xf32>
    %14 = arith.subf %12, %13 : vector<2x256xf32>
    %15 = arith.select %9, %7, %14 : vector<2x256xi1>, vector<2x256xf32>
    %16 = arith.truncf %15 : vector<2x256xf32> to vector<2x256xbf16>
    %c0_8 = arith.constant 0 : index
    %c0_9 = arith.constant 0 : index
    %17 = vector.load %arg3[%c0_8, %c0_9] : memref<256x256xf32, #tpu.memory_space<vmem>>, vector<256x256xf32>
    %18 = arith.truncf %17 : vector<256x256xf32> to vector<256x256xbf16>
    %cst_10 = arith.constant dense<0.000000e+00> : vector<2x256xf32>
    %19 = tpu.matmul %16, %18, %cst_10 {dimension_numbers = #tpu.dot_dimension_numbers<[1], [0], [0], [1], [0, 0, 1, 1], [], []>} : vector<2x256xbf16>, vector<256x256xbf16>, vector<2x256xf32> -> vector<2x256xf32>
    %c0_11 = arith.constant 0 : index
    %c0_12 = arith.constant 0 : index
    %20 = vector.load %arg4[%c0_11, %c0_12] : memref<1x256xf32, #tpu.memory_space<vmem>>, vector<1x256xf32>
    %21 = vector.broadcast %20 : vector<1x256xf32> to vector<2x256xf32>
    %22 = arith.addf %19, %21 : vector<2x256xf32>
    %cst_13 = arith.constant 0.000000e+00 : f32
    %23 = vector.broadcast %cst_13 : f32 to vector<2x256xf32>
    %24 = arith.cmpf ogt, %22, %23 : vector<2x256xf32>
    %cst_14 = arith.constant 0.000000e+00 : f32
    %25 = vector.broadcast %cst_14 : f32 to vector<2x256xf32>
    %26 = arith.minimumf %22, %25 : vector<2x256xf32>
    %27 = math.exp %26 : vector<2x256xf32>
    %cst_15 = arith.constant 1.000000e+00 : f32
    %28 = vector.broadcast %cst_15 : f32 to vector<2x256xf32>
    %29 = arith.subf %27, %28 : vector<2x256xf32>
    %30 = arith.select %24, %22, %29 : vector<2x256xi1>, vector<2x256xf32>
    %31 = arith.truncf %30 : vector<2x256xf32> to vector<2x256xbf16>
    %c0_16 = arith.constant 0 : index
    %c0_17 = arith.constant 0 : index
    %32 = vector.load %arg5[%c0_16, %c0_17] : memref<256x4xf32, #tpu.memory_space<vmem>>, vector<256x4xf32>
    %33 = arith.truncf %32 : vector<256x4xf32> to vector<256x4xbf16>
    %cst_18 = arith.constant dense<0.000000e+00> : vector<2x4xf32>
    %34 = tpu.matmul %31, %33, %cst_18 {dimension_numbers = #tpu.dot_dimension_numbers<[1], [0], [0], [1], [0, 0, 1, 1], [], []>} : vector<2x256xbf16>, vector<256x4xbf16>, vector<2x4xf32> -> vector<2x4xf32>
    %c0_19 = arith.constant 0 : index
    %c0_20 = arith.constant 0 : index
    %35 = vector.load %arg6[%c0_19, %c0_20] : memref<1x4xf32, #tpu.memory_space<vmem>>, vector<1x4xf32>
    %36 = vector.broadcast %35 : vector<1x4xf32> to vector<2x4xf32>
    %37 = arith.addf %34, %36 : vector<2x4xf32>
    %cst_21 = arith.constant dense<0xFF800000> : vector<2xf32>
    %38 = vector.multi_reduction <maximumf>, %37, %cst_21 [1] : vector<2x4xf32> to vector<2xf32>
    %39 = vector.shape_cast %38 : vector<2xf32> to vector<2x1xf32>
    %40 = vector.broadcast %39 : vector<2x1xf32> to vector<2x4xf32>
    %41 = arith.subf %37, %40 : vector<2x4xf32>
    %42 = math.exp %41 : vector<2x4xf32>
    %cst_22 = arith.constant dense<0.000000e+00> : vector<2xf32>
    %43 = vector.multi_reduction <add>, %42, %cst_22 [1] : vector<2x4xf32> to vector<2xf32>
    %44 = vector.shape_cast %43 : vector<2xf32> to vector<2x1xf32>
    %45 = vector.broadcast %44 : vector<2x1xf32> to vector<2x4xf32>
    %46 = arith.divf %42, %45 : vector<2x4xf32>
    %c0_23 = arith.constant 0 : index
    %c0_24 = arith.constant 0 : index
    %47 = vector.load %arg7[%c0_23, %c0_24] : memref<2x4xf32, #tpu.memory_space<vmem>>, vector<2x4xf32>
    tpu.vector_store %arg7[%c0_23, %c0_24], %46 {strides = array<i32>} : memref<2x4xf32, #tpu.memory_space<vmem>>, vector<2x4xf32>,
    return
  }
}

</mosaic_0001>

<llo_original>
// kernel: tpu_custom_call.1
$region0: #{tpu_custom_call.1}
  #allocation0 [shape = 'u32[]', space=smem, size = 0x4, offset = 0x4, fixed_abs, tag = 'smem constant byte address 0x4 - core index']
  #allocation1 [shape = 'u32[144,128]{1,0:T(1,128)}', space=vmem, size = 0x12000, scoped, tag = 'internal scratch']
  %s0 = inlined_call_operand.vmem [shape: f32[2,512], index: 0, kind: input, shape index: {}]
  %s1 = inlined_call_operand.hbm [shape: f32[512,256], index: 1, kind: input, shape index: {}]
  %s2 = inlined_call_operand.vmem [shape: f32[1,256], index: 2, kind: input, shape index: {}]
  %s3 = inlined_call_operand.hbm [shape: f32[256,256], index: 3, kind: input, shape index: {}]
  %s4 = inlined_call_operand.vmem [shape: f32[1,256], index: 4, kind: input, shape index: {}]
  %s5 = inlined_call_operand.vmem [shape: f32[256,4], index: 5, kind: input, shape index: {}]
  %s6 = inlined_call_operand.vmem [shape: f32[1,4], index: 6, kind: input, shape index: {}]
  %s7 = inlined_call_operand.hbm [shape: f32[2,4], index: 7, kind: output, shape index: {}]
  %s8 = sld [smem:[#allocation0]]
  $region46: #{tpu_custom_call.1} parent=0
    _
  %s10 = ssub.s32 1, %s8
  %s11 = scalar_select 0, %s10, %s8
  $region1: #{tpu_custom_call.1} parent=0
    #allocation2 [shape = 'u8[524288]{0}', space=vmem, size = 0x80000, scoped, tag = 'input window, operand 1, single buffered']
    #allocation3 [shape = 's32[1]{0}', space=sflag, size = 0x4, scoped, tag = 'scoped memory for tpu_custom_call.1']
    #allocation4 [shape = 's32[1]{0}', space=sflag, size = 0x4, scoped, tag = 'scoped memory for tpu_custom_call.1']
    #allocation5 [shape = 'u8[262144]{0}', space=vmem, size = 0x40000, scoped, tag = 'input window, operand 3, single buffered']
    #allocation6 [shape = 's32[1]{0}', space=sflag, size = 0x4, scoped, tag = 'scoped memory for tpu_custom_call.1']
    #allocation7 [shape = 'u8[1024]{0}', space=vmem, size = 0x400, scoped, tag = 'output window, operand 0, single buffered']
    %12 = vsyncpa [#allocation3], 0
    %13 = vsyncpa [#allocation6], 0
    %14 = vsyncpa [#allocation4], 0
    // Predicated region
    $region2: #{tpu_custom_call.1} parent=1 // pred_check
      _
    $region3: #{tpu_custom_call.1} parent=1 // pred_check_branch
      %16 = sbr.rel (0) target = $region5
    $region4: #{tpu_custom_call.1} parent=1 // pred_region
      _
    $region5: #{tpu_custom_call.1} parent=1 // pred_fallthru
      _
    // Predicated region
    $region6: #{tpu_custom_call.1} parent=1 // pred_check
      _
    $region7: #{tpu_custom_call.1} parent=1 // pred_check_branch
      %18 = sbr.rel (0) target = $region9
    $region8: #{tpu_custom_call.1} parent=1 // pred_region
      %s20 = ssub.s32 16384, 16384
      %21 = vsyncadd [#allocation3], %s20
      %s22 = sshll.u32 [#allocation2], 4
      %s23 = int_to_ptr.vmem [resolvable:$true] %s22
      %28 = dma.hbm_to_vmem [thread:$0]  %s1, 16384, %s23, [#allocation3], 256, 256, 16
    $region9: #{tpu_custom_call.1} parent=1 // pred_fallthru
      _
    // Predicated region
    $region10: #{tpu_custom_call.1} parent=1 // pred_check
      _
    $region11: #{tpu_custom_call.1} parent=1 // pred_check_branch
      %30 = sbr.rel (0) target = $region13
    $region12: #{tpu_custom_call.1} parent=1 // pred_region
      _
    $region13: #{tpu_custom_call.1} parent=1 // pred_fallthru
      _
    // Predicated region
    $region14: #{tpu_custom_call.1} parent=1 // pred_check
      _
    $region15: #{tpu_custom_call.1} parent=1 // pred_check_branch
      %32 = sbr.rel (0) target = $region17
    $region16: #{tpu_custom_call.1} parent=1 // pred_region
      %s34 = ssub.s32 8192, 8192
      %35 = vsyncadd [#allocation6], %s34
      %s36 = sshll.u32 [#allocation5], 4
      %s37 = int_to_ptr.vmem [resolvable:$true] %s36
      %42 = dma.hbm_to_vmem [thread:$0]  %s3, 8192, %s37, [#allocation6], 256, 256, 16
    $region17: #{tpu_custom_call.1} parent=1 // pred_fallthru
      _
    // Predicated region
    $region18: #{tpu_custom_call.1} parent=1 // pred_check
      _
    $region19: #{tpu_custom_call.1} parent=1 // pred_check_branch
      %44 = sbr.rel (0) target = $region21
    $region20: #{tpu_custom_call.1} parent=1 // pred_region
      _
    $region21: #{tpu_custom_call.1} parent=1 // pred_fallthru
      _
    // Predicated region
    $region22: #{tpu_custom_call.1} parent=1 // pred_check
      _
    $region23: #{tpu_custom_call.1} parent=1 // pred_check_branch
      %46 = sbr.rel (0) target = $region25
    $region24: #{tpu_custom_call.1} parent=1 // pred_region
      _
    $region25: #{tpu_custom_call.1} parent=1 // pred_fallthru
      _
    // Predicated region
    $region26: #{tpu_custom_call.1} parent=1 // pred_check
      _
    $region27: #{tpu_custom_call.1} parent=1 // pred_check_branch
      %48 = sbr.rel (0) target = $region29
    $region28: #{tpu_custom_call.1} parent=1 // pred_region
      _
    $region29: #{tpu_custom_call.1} parent=1 // pred_fallthru
      _
    // Predicated region
    $region30: #{tpu_custom_call.1} parent=1 // pred_check
      _
    $region31: #{tpu_custom_call.1} parent=1 // pred_check_branch
      %50 = sbr.rel (0) target = $region33
    $region32: #{tpu_custom_call.1} parent=1 // pred_region
      %51 = dma.done [#allocation3], 16384
    $region33: #{tpu_custom_call.1} parent=1 // pred_fallthru
      _
    // Predicated region
    $region34: #{tpu_custom_call.1} parent=1 // pred_check
      _
    $region35: #{tpu_custom_call.1} parent=1 // pred_check_branch
      %53 = sbr.rel (0) target = $region37
    $region36: #{tpu_custom_call.1} parent=1 // pred_region
      %54 = dma.done [#allocation6], 8192
    $region37: #{tpu_custom_call.1} parent=1 // pred_fallthru
      _
    %v56 = vld [vmem:[%s0] sm:$0xff]
    %v58 = vcombine.high %v56, %v56
    %v60 = vunpack.c.l.s4 1983009808
    %v61 = vunpack.c.0.s8 %v60
    %v62 = vlaneseq
    %v63 = vshrl.u32 %v62, 7
    %v64 = vsub.s32 %v61, %v63
    %v65 = vrot.slane %v56, %v64
    %v67 = vunpack.c.l.s4 1983009808
    %v68 = vunpack.c.0.s8 %v67
    %v69 = vlaneseq
    %v70 = vshrl.u32 %v69, 7
    %v71 = vsub.s32 %v68, %v70
    %v72 = vrot.slane %v58, %v71
    %v73 = vcombine.high %v65, %v65
    %v74 = vcombine.high %v72, %v72
    %v79 = vpack.c.bf16 %v65, %v65
    %v80 = vpack.c.bf16 %v73, %v73
    %v81 = vpack.c.bf16 %v72, %v72
    %v82 = vpack.c.bf16 %v74, %v74
    %v83 = vld [vmem:[#allocation2] sm:$0xff]
    %v84 = vld [vmem:[#allocation2 + $0x8] sm:$0xff]
    %v85 = vld [vmem:[#allocation2 + $0x10] sm:$0xff]
    %v86 = vld [vmem:[#allocation2 + $0x18] sm:$0xff]
    %v87 = vld [vmem:[#allocation2 + $0x20] sm:$0xff]
    %v88 = vld [vmem:[#allocation2 + $0x28] sm:$0xff]
    %v89 = vld [vmem:[#allocation2 + $0x30] sm:$0xff]
    %v90 = vld [vmem:[#allocation2 + $0x38] sm:$0xff]
    %v91 = vld [vmem:[#allocation2 + $0x40] sm:$0xff]
    %v92 = vld [vmem:[#allocation2 + $0x48] sm:$0xff]
    %v93 = vld [vmem:[#allocation2 + $0x50] sm:$0xff]
    %v94 = vld [vmem:[#allocation2 + $0x58] sm:$0xff]
    %v95 = vld [vmem:[#allocation2 + $0x60] sm:$0xff]
    %v96 = vld [vmem:[#allocation2 + $0x68] sm:$0xff]
    %v97 = vld [vmem:[#allocation2 + $0x70] sm:$0xff]
    %v98 = vld [vmem:[#allocation2 + $0x78] sm:$0xff]
    %v99 = vld [vmem:[#allocation2 + $0x80] sm:$0xff]
    %v100 = vld [vmem:[#allocation2 + $0x88] sm:$0xff]
    %v101 = vld [vmem:[#allocation2 + $0x90] sm:$0xff]
    %v102 = vld [vmem:[#allocation2 + $0x98] sm:$0xff]
    %v103 = vld [vmem:[#allocation2 + $0xa0] sm:$0xff]
    %v104 = vld [vmem:[#allocation2 + $0xa8] sm:$0xff]
    %v105 = vld [vmem:[#allocation2 + $0xb0] sm:$0xff]
    %v106 = vld [vmem:[#allocation2 + $0xb8] sm:$0xff]
    %v107 = vld [vmem:[#allocation2 + $0xc0] sm:$0xff]
    %v108 = vld [vmem:[#allocation2 + $0xc8] sm:$0xff]
    %v109 = vld [vmem:[#allocation2 + $0xd0] sm:$0xff]
    %v110 = vld [vmem:[#allocation2 + $0xd8] sm:$0xff]
    %v111 = vld [vmem:[#allocation2 + $0xe0] sm:$0xff]
    %v112 = vld [vmem:[#allocation2 + $0xe8] sm:$0xff]
    %v113 = vld [vmem:[#allocation2 + $0xf0] sm:$0xff]
    %v114 = vld [vmem:[#allocation2 + $0xf8] sm:$0xff]
    %v115 = vld [vmem:[#allocation2 + $0x100] sm:$0xff]
    %v116 = vld [vmem:[#allocation2 + $0x108] sm:$0xff]
    %v117 = vld [vmem:[#allocation2 + $0x110] sm:$0xff]
    %v118 = vld [vmem:[#allocation2 + $0x118] sm:$0xff]
    %v119 = vld [vmem:[#allocation2 + $0x120] sm:$0xff]
    %v120 = vld [vmem:[#allocation2 + $0x128] sm:$0xff]
    %v121 = vld [vmem:[#allocation2 + $0x130] sm:$0xff]
    %v122 = vld [vmem:[#allocation2 + $0x138] sm:$0xff]
    %v123 = vld [vmem:[#allocation2 + $0x140] sm:$0xff]
    %v124 = vld [vmem:[#allocation2 + $0x148] sm:$0xff]
    %v125 = vld [vmem:[#allocation2 + $0x150] sm:$0xff]
    %v126 = vld [vmem:[#allocation2 + $0x158] sm:$0xff]
    %v127 = vld [vmem:[#allocation2 + $0x160] sm:$0xff]
    %v128 = vld [vmem:[#allocation2 + $0x168] sm:$0xff]
    %v129 = vld [vmem:[#allocation2 + $0x170] sm:$0xff]
    %v130 = vld [vmem:[#allocation2 + $0x178] sm:$0xff]
    %v131 = vld [vmem:[#allocation2 + $0x180] sm:$0xff]
    %v132 = vld [vmem:[#allocation2 + $0x188] sm:$0xff]
    %v133 = vld [vmem:[#allocation2 + $0x190] sm:$0xff]
    %v134 = vld [vmem:[#allocation2 + $0x198] sm:$0xff]
    %v135 = vld [vmem:[#allocation2 + $0x1a0] sm:$0xff]
    %v136 = vld [vmem:[#allocation2 + $0x1a8] sm:$0xff]
    %v137 = vld [vmem:[#allocation2 + $0x1b0] sm:$0xff]
    %v138 = vld [vmem:[#allocation2 + $0x1b8] sm:$0xff]
    %v139 = vld [vmem:[#allocation2 + $0x1c0] sm:$0xff]
    %v140 = vld [vmem:[#allocation2 + $0x1c8] sm:$0xff]
    %v141 = vld [vmem:[#allocation2 + $0x1d0] sm:$0xff]
    %v142 = vld [vmem:[#allocation2 + $0x1d8] sm:$0xff]
    %v143 = vld [vmem:[#allocation2 + $0x1e0] sm:$0xff]
    %v144 = vld [vmem:[#allocation2 + $0x1e8] sm:$0xff]
    %v145 = vld [vmem:[#allocation2 + $0x1f0] sm:$0xff]
    %v146 = vld [vmem:[#allocation2 + $0x1f8] sm:$0xff]
    %v147 = vld [vmem:[#allocation2 + $0x200] sm:$0xff]
    %v148 = vld [vmem:[#allocation2 + $0x208] sm:$0xff]
    %v149 = vld [vmem:[#allocation2 + $0x210] sm:$0xff]
    %v150 = vld [vmem:[#allocation2 + $0x218] sm:$0xff]
    %v151 = vld [vmem:[#allocation2 + $0x220] sm:$0xff]
    %v152 = vld [vmem:[#allocation2 + $0x228] sm:$0xff]
    %v153 = vld [vmem:[#allocation2 + $0x230] sm:$0xff]
    %v154 = vld [vmem:[#allocation2 + $0x238] sm:$0xff]
    %v155 = vld [vmem:[#allocation2 + $0x240] sm:$0xff]
    %v156 = vld [vmem:[#allocation2 + $0x248] sm:$0xff]
    %v157 = vld [vmem:[#allocation2 + $0x250] sm:$0xff]
    %v158 = vld [vmem:[#allocation2 + $0x258] sm:$0xff]
    %v159 = vld [vmem:[#allocation2 + $0x260] sm:$0xff]
    %v160 = vld [vmem:[#allocation2 + $0x268] sm:$0xff]
    %v161 = vld [vmem:[#allocation2 + $0x270] sm:$0xff]
    %v162 = vld [vmem:[#allocation2 + $0x278] sm:$0xff]
    %v163 = vld [vmem:[#allocation2 + $0x280] sm:$0xff]
    %v164 = vld [vmem:[#allocation2 + $0x288] sm:$0xff]
    %v165 = vld [vmem:[#allocation2 + $0x290] sm:$0xff]
    %v166 = vld [vmem:[#allocation2 + $0x298] sm:$0xff]
    %v167 = vld [vmem:[#allocation2 + $0x2a0] sm:$0xff]
    %v168 = vld [vmem:[#allocation2 + $0x2a8] sm:$0xff]
    %v169 = vld [vmem:[#allocation2 + $0x2b0] sm:$0xff]
    %v170 = vld [vmem:[#allocation2 + $0x2b8] sm:$0xff]
    %v171 = vld [vmem:[#allocation2 + $0x2c0] sm:$0xff]
    %v172 = vld [vmem:[#allocation2 + $0x2c8] sm:$0xff]
    %v173 = vld [vmem:[#allocation2 + $0x2d0] sm:$0xff]
    %v174 = vld [vmem:[#allocation2 + $0x2d8] sm:$0xff]
    %v175 = vld [vmem:[#allocation2 + $0x2e0] sm:$0xff]
    %v176 = vld [vmem:[#allocation2 + $0x2e8] sm:$0xff]
    %v177 = vld [vmem:[#allocation2 + $0x2f0] sm:$0xff]
    %v178 = vld [vmem:[#allocation2 + $0x2f8] sm:$0xff]
    %v179 = vld [vmem:[#allocation2 + $0x300] sm:$0xff]
    %v180 = vld [vmem:[#allocation2 + $0x308] sm:$0xff]
    %v181 = vld [vmem:[#allocation2 + $0x310] sm:$0xff]
    %v182 = vld [vmem:[#allocation2 + $0x318] sm:$0xff]
    %v183 = vld [vmem:[#allocation2 + $0x320] sm:$0xff]
    %v184 = vld [vmem:[#allocation2 + $0x328] sm:$0xff]
    %v185 = vld [vmem:[#allocation2 + $0x330] sm:$0xff]
    %v186 = vld [vmem:[#allocation2 + $0x338] sm:$0xff]
    %v187 = vld [vmem:[#allocation2 + $0x340] sm:$0xff]
    %v188 = vld [vmem:[#allocation2 + $0x348] sm:$0xff]
    %v189 = vld [vmem:[#allocation2 + $0x350] sm:$0xff]
    %v190 = vld [vmem:[#allocation2 + $0x358] sm:$0xff]
    %v191 = vld [vmem:[#allocation2 + $0x360] sm:$0xff]
    %v192 = vld [vmem:[#allocation2 + $0x368] sm:$0xff]
    %v193 = vld [vmem:[#allocation2 + $0x370] sm:$0xff]
    %v194 = vld [vmem:[#allocation2 + $0x378] sm:$0xff]
    %v195 = vld [vmem:[#allocation2 + $0x380] sm:$0xff]
    %v196 = vld [vmem:[#allocation2 + $0x388] sm:$0xff]
    %v197 = vld [vmem:[#allocation2 + $0x390] sm:$0xff]
    %v198 = vld [vmem:[#allocation2 + $0x398] sm:$0xff]
    %v199 = vld [vmem:[#allocation2 + $0x3a0] sm:$0xff]
    %v200 = vld [vmem:[#allocation2 + $0x3a8] sm:$0xff]
    %v201 = vld [vmem:[#allocation2 + $0x3b0] sm:$0xff]
    %v202 = vld [vmem:[#allocation2 + $0x3b8] sm:$0xff]
    %v203 = vld [vmem:[#allocation2 + $0x3c0] sm:$0xff]
    %v204 = vld [vmem:[#allocation2 + $0x3c8] sm:$0xff]
    %v205 = vld [vmem:[#allocation2 + $0x3d0] sm:$0xff]
    %v206 = vld [vmem:[#allocation2 + $0x3d8] sm:$0xff]
    %v207 = vld [vmem:[#allocation2 + $0x3e0] sm:$0xff]
    %v208 = vld [vmem:[#allocation2 + $0x3e8] sm:$0xff]
    %v209 = vld [vmem:[#allocation2 + $0x3f0] sm:$0xff]
    %v210 = vld [vmem:[#allocation2 + $0x3f8] sm:$0xff]
    %v211 = vpack.c.bf16 %v85, %v83
    %v212 = vpack.c.bf16 %v86, %v84
    %v213 = vpack.c.bf16 %v89, %v87
    %v214 = vpack.c.bf16 %v90, %v88
    %v215 = vpack.c.bf16 %v93, %v91
    %v216 = vpack.c.bf16 %v94, %v92
    %v217 = vpack.c.bf16 %v97, %v95
    %v218 = vpack.c.bf16 %v98, %v96
    %v219 = vpack.c.bf16 %v101, %v99
    %v220 = vpack.c.bf16 %v102, %v100
    %v221 = vpack.c.bf16 %v105, %v103
    %v222 = vpack.c.bf16 %v106, %v104
    %v223 = vpack.c.bf16 %v109, %v107
    %v224 = vpack.c.bf16 %v110, %v108
    %v225 = vpack.c.bf16 %v113, %v111
    %v226 = vpack.c.bf16 %v114, %v112
    %v227 = vpack.c.bf16 %v117, %v115
    %v228 = vpack.c.bf16 %v118, %v116
    %v229 = vpack.c.bf16 %v121, %v119
    %v230 = vpack.c.bf16 %v122, %v120
    %v231 = vpack.c.bf16 %v125, %v123
    %v232 = vpack.c.bf16 %v126, %v124
    %v233 = vpack.c.bf16 %v129, %v127
    %v234 = vpack.c.bf16 %v130, %v128
    %v235 = vpack.c.bf16 %v133, %v131
    %v236 = vpack.c.bf16 %v134, %v132
    %v237 = vpack.c.bf16 %v137, %v135
    %v238 = vpack.c.bf16 %v138, %v136
    %v239 = vpack.c.bf16 %v141, %v139
    %v240 = vpack.c.bf16 %v142, %v140
    %v241 = vpack.c.bf16 %v145, %v143
    %v242 = vpack.c.bf16 %v146, %v144
    %v243 = vpack.c.bf16 %v149, %v147
    %v244 = vpack.c.bf16 %v150, %v148
    %v245 = vpack.c.bf16 %v153, %v151
    %v246 = vpack.c.bf16 %v154, %v152
    %v247 = vpack.c.bf16 %v157, %v155
    %v248 = vpack.c.bf16 %v158, %v156
    %v249 = vpack.c.bf16 %v161, %v159
    %v250 = vpack.c.bf16 %v162, %v160
    %v251 = vpack.c.bf16 %v165, %v163
    %v252 = vpack.c.bf16 %v166, %v164
    %v253 = vpack.c.bf16 %v169, %v167
    %v254 = vpack.c.bf16 %v170, %v168
    %v255 = vpack.c.bf16 %v173, %v171
    %v256 = vpack.c.bf16 %v174, %v172
    %v257 = vpack.c.bf16 %v177, %v175
    %v258 = vpack.c.bf16 %v178, %v176
    %v259 = vpack.c.bf16 %v181, %v179
    %v260 = vpack.c.bf16 %v182, %v180
    %v261 = vpack.c.bf16 %v185, %v183
    %v262 = vpack.c.bf16 %v186, %v184
    %v263 = vpack.c.bf16 %v189, %v187
    %v264 = vpack.c.bf16 %v190, %v188
    %v265 = vpack.c.bf16 %v193, %v191
    %v266 = vpack.c.bf16 %v194, %v192
    %v267 = vpack.c.bf16 %v197, %v195
    %v268 = vpack.c.bf16 %v198, %v196
    %v269 = vpack.c.bf16 %v201, %v199
    %v270 = vpack.c.bf16 %v202, %v200
    %v271 = vpack.c.bf16 %v205, %v203
    %v272 = vpack.c.bf16 %v206, %v204
    %v273 = vpack.c.bf16 %v209, %v207
    %v274 = vpack.c.bf16 %v210, %v208
    %v275 = vld [vmem:[%s2] sm:$0x3]
    %v277 = vlaneseq
    %v278 = vshrl.u32 %v277, 7
    %v279 = vsub.s32 0, %v278
    %v280 = vrot.slane %v275, %v279
    %v281 = vlaneseq
    %v282 = vshrl.u32 %v281, 7
    %v283 = vsub.s32 1, %v282
    %v284 = vrot.slane %v275, %v283
    %287 = vmatprep.subr.bf16.mxu0 %v212
    %288 = vmatpush1.bf16.msra.mxu0 %v211
    %289 = vmatprep.subr.bf16.mxu0 %v214
    %290 = vmatpush1.bf16.msra.mxu0 %v213
    %291 = vmatprep.subr.bf16.mxu0 %v216
    %292 = vmatpush1.bf16.msra.mxu0 %v215
    %293 = vmatprep.subr.bf16.mxu0 %v218
    %294 = vmatpush1.bf16.msra.mxu0 %v217
    %295 = vmatprep.subr.bf16.mxu0 %v220
    %296 = vmatpush1.bf16.msra.mxu0 %v219
    %297 = vmatprep.subr.bf16.mxu0 %v222
    %298 = vmatpush1.bf16.msra.mxu0 %v221
    %299 = vmatprep.subr.bf16.mxu0 %v224
    %300 = vmatpush1.bf16.msra.mxu0 %v223
    %301 = vmatprep.subr.bf16.mxu0 %v226
    %302 = vmatpush1.bf16.msra.mxu0 %v225
    %303 = vmatprep.subr.bf16.mxu0 %v228
    %304 = vmatpush1.bf16.msra.mxu0 %v227
    %305 = vmatprep.subr.bf16.mxu0 %v230
    %306 = vmatpush1.bf16.msra.mxu0 %v229
    %307 = vmatprep.subr.bf16.mxu0 %v232
    %308 = vmatpush1.bf16.msra.mxu0 %v231
    %309 = vmatprep.subr.bf16.mxu0 %v234
    %310 = vmatpush1.bf16.msra.mxu0 %v233
    %311 = vmatprep.subr.bf16.mxu0 %v236
    %312 = vmatpush1.bf16.msra.mxu0 %v235
    %313 = vmatprep.subr.bf16.mxu0 %v238
    %314 = vmatpush1.bf16.msra.mxu0 %v237
    %315 = vmatprep.subr.bf16.mxu0 %v240
    %316 = vmatpush1.bf16.msra.mxu0 %v239
    %317 = vmatprep.subr.bf16.mxu0 %v242
    %318 = vmatpush1.bf16.msra.mxu0 %v241
    %319 = vmatprep.mubr.bf16.mxu0 %v80
    %320 = vmatmul.mubr.bf16.gmra.mrb[0].mxu0 %v79
    %v321 = vpop.f32.mrb[0].mxu0
    %v322 = vadd.f32 %v280, %v321
    %v323 = vpop.f32.mrb[0].mxu0
    %v324 = vadd.f32 %v284, %v323
    %v325 = vpop.f32.mrb[0].mxu0
    %v326 = vpop.f32.mrb[0].mxu0
    %327 = vdwg.mxu0
    %328 = vmatprep.subr.bf16.mxu0 %v244
    %329 = vmatpush1.bf16.msra.mxu0 %v243
    %330 = vmatprep.subr.bf16.mxu0 %v246
    %331 = vmatpush1.bf16.msra.mxu0 %v245
    %332 = vmatprep.subr.bf16.mxu0 %v248
    %333 = vmatpush1.bf16.msra.mxu0 %v247
    %334 = vmatprep.subr.bf16.mxu0 %v250
    %335 = vmatpush1.bf16.msra.mxu0 %v249
    %336 = vmatprep.subr.bf16.mxu0 %v252
    %337 = vmatpush1.bf16.msra.mxu0 %v251
    %338 = vmatprep.subr.bf16.mxu0 %v254
    %339 = vmatpush1.bf16.msra.mxu0 %v253
    %340 = vmatprep.subr.bf16.mxu0 %v256
    %341 = vmatpush1.bf16.msra.mxu0 %v255
    %342 = vmatprep.subr.bf16.mxu0 %v258
    %343 = vmatpush1.bf16.msra.mxu0 %v257
    %344 = vmatprep.subr.bf16.mxu0 %v260
    %345 = vmatpush1.bf16.msra.mxu0 %v259
    %346 = vmatprep.subr.bf16.mxu0 %v262
    %347 = vmatpush1.bf16.msra.mxu0 %v261
    %348 = vmatprep.subr.bf16.mxu0 %v264
    %349 = vmatpush1.bf16.msra.mxu0 %v263
    %350 = vmatprep.subr.bf16.mxu0 %v266
    %351 = vmatpush1.bf16.msra.mxu0 %v265
    %352 = vmatprep.subr.bf16.mxu0 %v268
    %353 = vmatpush1.bf16.msra.mxu0 %v267
    %354 = vmatprep.subr.bf16.mxu0 %v270
    %355 = vmatpush1.bf16.msra.mxu0 %v269
    %356 = vmatprep.subr.bf16.mxu0 %v272
    %357 = vmatpush1.bf16.msra.mxu0 %v271
    %358 = vmatprep.subr.bf16.mxu0 %v274
    %359 = vmatpush1.bf16.msra.mxu0 %v273
    %360 = vmatprep.mubr.bf16.mxu0 %v82
    %361 = vmatmul.mubr.bf16.gmra.mrb[0].mxu0 %v81
    %v362 = vpop.f32.mrb[0].mxu0
    %v363 = vadd.f32 %v322, %v362
    %v364 = vpop.f32.mrb[0].mxu0
    %v365 = vadd.f32 %v324, %v364
    %v366 = vpop.f32.mrb[0].mxu0
    %v367 = vpop.f32.mrb[0].mxu0
    %368 = vdwg.mxu0
    %vm369 = vcmp.gt.f32.partialorder %v363, 0.0
    %vm370 = vcmp.gt.f32.partialorder %v365, 0.0
    %v371 = vmin.f32 %v363, 0.0
    %v372 = vmin.f32 %v365, 0.0
    %v373 = vmul.f32 %v371, 1.442695
    %v374 = vpow.pop %v373
    %v375 = vmul.f32 %v372, 1.442695
    %v376 = vpow.pop %v375
    %v377 = vsub.f32 %v374, 1.0
    %v378 = vsub.f32 %v376, 1.0
    %v379 = vsel %vm369, %v363, %v377
    %v380 = vsel %vm370, %v365, %v378
    %v381 = vpack.c.bf16 %v379, %v379
    %v382 = vpack.c.bf16 %v380, %v380
    %v383 = vld [vmem:[#allocation5] sm:$0xff]
    %v384 = vld [vmem:[#allocation5 + $0x8] sm:$0xff]
    %v385 = vld [vmem:[#allocation5 + $0x10] sm:$0xff]
    %v386 = vld [vmem:[#allocation5 + $0x18] sm:$0xff]
    %v387 = vld [vmem:[#allocation5 + $0x20] sm:$0xff]
    %v388 = vld [vmem:[#allocation5 + $0x28] sm:$0xff]
    %v389 = vld [vmem:[#allocation5 + $0x30] sm:$0xff]
    %v390 = vld [vmem:[#allocation5 + $0x38] sm:$0xff]
    %v391 = vld [vmem:[#allocation5 + $0x40] sm:$0xff]
    %v392 = vld [vmem:[#allocation5 + $0x48] sm:$0xff]
    %v393 = vld [vmem:[#allocation5 + $0x50] sm:$0xff]
    %v394 = vld [vmem:[#allocation5 + $0x58] sm:$0xff]
    %v395 = vld [vmem:[#allocation5 + $0x60] sm:$0xff]
    %v396 = vld [vmem:[#allocation5 + $0x68] sm:$0xff]
    %v397 = vld [vmem:[#allocation5 + $0x70] sm:$0xff]
    %v398 = vld [vmem:[#allocation5 + $0x78] sm:$0xff]
    %v399 = vld [vmem:[#allocation5 + $0x80] sm:$0xff]
    %v400 = vld [vmem:[#allocation5 + $0x88] sm:$0xff]
    %v401 = vld [vmem:[#allocation5 + $0x90] sm:$0xff]
    %v402 = vld [vmem:[#allocation5 + $0x98] sm:$0xff]
    %v403 = vld [vmem:[#allocation5 + $0xa0] sm:$0xff]
    %v404 = vld [vmem:[#allocation5 + $0xa8] sm:$0xff]
    %v405 = vld [vmem:[#allocation5 + $0xb0] sm:$0xff]
    %v406 = vld [vmem:[#allocation5 + $0xb8] sm:$0xff]
    %v407 = vld [vmem:[#allocation5 + $0xc0] sm:$0xff]
    %v408 = vld [vmem:[#allocation5 + $0xc8] sm:$0xff]
    %v409 = vld [vmem:[#allocation5 + $0xd0] sm:$0xff]
    %v410 = vld [vmem:[#allocation5 + $0xd8] sm:$0xff]
    %v411 = vld [vmem:[#allocation5 + $0xe0] sm:$0xff]
    %v412 = vld [vmem:[#allocation5 + $0xe8] sm:$0xff]
    %v413 = vld [vmem:[#allocation5 + $0xf0] sm:$0xff]
    %v414 = vld [vmem:[#allocation5 + $0xf8] sm:$0xff]
    %v415 = vld [vmem:[#allocation5 + $0x100] sm:$0xff]
    %v416 = vld [vmem:[#allocation5 + $0x108] sm:$0xff]
    %v417 = vld [vmem:[#allocation5 + $0x110] sm:$0xff]
    %v418 = vld [vmem:[#allocation5 + $0x118] sm:$0xff]
    %v419 = vld [vmem:[#allocation5 + $0x120] sm:$0xff]
    %v420 = vld [vmem:[#allocation5 + $0x128] sm:$0xff]
    %v421 = vld [vmem:[#allocation5 + $0x130] sm:$0xff]
    %v422 = vld [vmem:[#allocation5 + $0x138] sm:$0xff]
    %v423 = vld [vmem:[#allocation5 + $0x140] sm:$0xff]
    %v424 = vld [vmem:[#allocation5 + $0x148] sm:$0xff]
    %v425 = vld [vmem:[#allocation5 + $0x150] sm:$0xff]
    %v426 = vld [vmem:[#allocation5 + $0x158] sm:$0xff]
    %v427 = vld [vmem:[#allocation5 + $0x160] sm:$0xff]
    %v428 = vld [vmem:[#allocation5 + $0x168] sm:$0xff]
    %v429 = vld [vmem:[#allocation5 + $0x170] sm:$0xff]
    %v430 = vld [vmem:[#allocation5 + $0x178] sm:$0xff]
    %v431 = vld [vmem:[#allocation5 + $0x180] sm:$0xff]
    %v432 = vld [vmem:[#allocation5 + $0x188] sm:$0xff]
    %v433 = vld [vmem:[#allocation5 + $0x190] sm:$0xff]
    %v434 = vld [vmem:[#allocation5 + $0x198] sm:$0xff]
    %v435 = vld [vmem:[#allocation5 + $0x1a0] sm:$0xff]
    %v436 = vld [vmem:[#allocation5 + $0x1a8] sm:$0xff]
    %v437 = vld [vmem:[#allocation5 + $0x1b0] sm:$0xff]
    %v438 = vld [vmem:[#allocation5 + $0x1b8] sm:$0xff]
    %v439 = vld [vmem:[#allocation5 + $0x1c0] sm:$0xff]
    %v440 = vld [vmem:[#allocation5 + $0x1c8] sm:$0xff]
    %v441 = vld [vmem:[#allocation5 + $0x1d0] sm:$0xff]
    %v442 = vld [vmem:[#allocation5 + $0x1d8] sm:$0xff]
    %v443 = vld [vmem:[#allocation5 + $0x1e0] sm:$0xff]
    %v444 = vld [vmem:[#allocation5 + $0x1e8] sm:$0xff]
    %v445 = vld [vmem:[#allocation5 + $0x1f0] sm:$0xff]
    %v446 = vld [vmem:[#allocation5 + $0x1f8] sm:$0xff]
    %v447 = vpack.c.bf16 %v385, %v383
    %v448 = vpack.c.bf16 %v386, %v384
    %v449 = vpack.c.bf16 %v389, %v387
    %v450 = vpack.c.bf16 %v390, %v388
    %v451 = vpack.c.bf16 %v393, %v391
    %v452 = vpack.c.bf16 %v394, %v392
    %v453 = vpack.c.bf16 %v397, %v395
    %v454 = vpack.c.bf16 %v398, %v396
    %v455 = vpack.c.bf16 %v401, %v399
    %v456 = vpack.c.bf16 %v402, %v400
    %v457 = vpack.c.bf16 %v405, %v403
    %v458 = vpack.c.bf16 %v406, %v404
    %v459 = vpack.c.bf16 %v409, %v407
    %v460 = vpack.c.bf16 %v410, %v408
    %v461 = vpack.c.bf16 %v413, %v411
    %v462 = vpack.c.bf16 %v414, %v412
    %v463 = vpack.c.bf16 %v417, %v415
    %v464 = vpack.c.bf16 %v418, %v416
    %v465 = vpack.c.bf16 %v421, %v419
    %v466 = vpack.c.bf16 %v422, %v420
    %v467 = vpack.c.bf16 %v425, %v423
    %v468 = vpack.c.bf16 %v426, %v424
    %v469 = vpack.c.bf16 %v429, %v427
    %v470 = vpack.c.bf16 %v430, %v428
    %v471 = vpack.c.bf16 %v433, %v431
    %v472 = vpack.c.bf16 %v434, %v432
    %v473 = vpack.c.bf16 %v437, %v435
    %v474 = vpack.c.bf16 %v438, %v436
    %v475 = vpack.c.bf16 %v441, %v439
    %v476 = vpack.c.bf16 %v442, %v440
    %v477 = vpack.c.bf16 %v445, %v443
    %v478 = vpack.c.bf16 %v446, %v444
    %v479 = vld [vmem:[%s4] sm:$0x3]
    %v481 = vlaneseq
    %v482 = vshrl.u32 %v481, 7
    %v483 = vsub.s32 0, %v482
    %v484 = vrot.slane %v479, %v483
    %v485 = vlaneseq
    %v486 = vshrl.u32 %v485, 7
    %v487 = vsub.s32 1, %v486
    %v488 = vrot.slane %v479, %v487
    %491 = vmatprep.subr.bf16.mxu0 %v448
    %492 = vmatpush1.bf16.msra.mxu0 %v447
    %493 = vmatprep.subr.bf16.mxu0 %v450
    %494 = vmatpush1.bf16.msra.mxu0 %v449
    %495 = vmatprep.subr.bf16.mxu0 %v452
    %496 = vmatpush1.bf16.msra.mxu0 %v451
    %497 = vmatprep.subr.bf16.mxu0 %v454
    %498 = vmatpush1.bf16.msra.mxu0 %v453
    %499 = vmatprep.subr.bf16.mxu0 %v456
    %500 = vmatpush1.bf16.msra.mxu0 %v455
    %501 = vmatprep.subr.bf16.mxu0 %v458
    %502 = vmatpush1.bf16.msra.mxu0 %v457
    %503 = vmatprep.subr.bf16.mxu0 %v460
    %504 = vmatpush1.bf16.msra.mxu0 %v459
    %505 = vmatprep.subr.bf16.mxu0 %v462
    %506 = vmatpush1.bf16.msra.mxu0 %v461
    %507 = vmatprep.subr.bf16.mxu0 %v464
    %508 = vmatpush1.bf16.msra.mxu0 %v463
    %509 = vmatprep.subr.bf16.mxu0 %v466
    %510 = vmatpush1.bf16.msra.mxu0 %v465
    %511 = vmatprep.subr.bf16.mxu0 %v468
    %512 = vmatpush1.bf16.msra.mxu0 %v467
    %513 = vmatprep.subr.bf16.mxu0 %v470
    %514 = vmatpush1.bf16.msra.mxu0 %v469
    %515 = vmatprep.subr.bf16.mxu0 %v472
    %516 = vmatpush1.bf16.msra.mxu0 %v471
    %517 = vmatprep.subr.bf16.mxu0 %v474
    %518 = vmatpush1.bf16.msra.mxu0 %v473
    %519 = vmatprep.subr.bf16.mxu0 %v476
    %520 = vmatpush1.bf16.msra.mxu0 %v475
    %521 = vmatprep.subr.bf16.mxu0 %v478
    %522 = vmatpush1.bf16.msra.mxu0 %v477
    %523 = vmatprep.mubr.bf16.mxu0 %v382
    %524 = vmatmul.mubr.bf16.gmra.mrb[0].mxu0 %v381
    %v525 = vpop.f32.mrb[0].mxu0
    %v526 = vadd.f32 %v484, %v525
    %v527 = vpop.f32.mrb[0].mxu0
    %v528 = vadd.f32 %v488, %v527
    %v529 = vpop.f32.mrb[0].mxu0
    %v530 = vpop.f32.mrb[0].mxu0
    %531 = vdwg.mxu0
    %vm532 = vcmp.gt.f32.partialorder %v526, 0.0
    %vm533 = vcmp.gt.f32.partialorder %v528, 0.0
    %v534 = vmin.f32 %v526, 0.0
    %v535 = vmin.f32 %v528, 0.0
    %v536 = vmul.f32 %v534, 1.442695
    %v537 = vpow.pop %v536
    %v538 = vmul.f32 %v535, 1.442695
    %v539 = vpow.pop %v538
    %v540 = vsub.f32 %v537, 1.0
    %v541 = vsub.f32 %v539, 1.0
    %v542 = vsel %vm532, %v526, %v540
    %v543 = vsel %vm533, %v528, %v541
    %v544 = vpack.c.bf16 %v542, %v542
    %v545 = vpack.c.bf16 %v543, %v543
    %v546 = vld [vmem:[%s5] sm:$0xff]
    %v547 = vld [vmem:[%s5 + $0x8] sm:$0xff]
    %v548 = vld [vmem:[%s5 + $0x10] sm:$0xff]
    %v549 = vld [vmem:[%s5 + $0x18] sm:$0xff]
    %v550 = vld [vmem:[%s5 + $0x20] sm:$0xff]
    %v551 = vld [vmem:[%s5 + $0x28] sm:$0xff]
    %v552 = vld [vmem:[%s5 + $0x30] sm:$0xff]
    %v553 = vld [vmem:[%s5 + $0x38] sm:$0xff]
    %v554 = vld [vmem:[%s5 + $0x40] sm:$0xff]
    %v555 = vld [vmem:[%s5 + $0x48] sm:$0xff]
    %v556 = vld [vmem:[%s5 + $0x50] sm:$0xff]
    %v557 = vld [vmem:[%s5 + $0x58] sm:$0xff]
    %v558 = vld [vmem:[%s5 + $0x60] sm:$0xff]
    %v559 = vld [vmem:[%s5 + $0x68] sm:$0xff]
    %v560 = vld [vmem:[%s5 + $0x70] sm:$0xff]
    %v561 = vld [vmem:[%s5 + $0x78] sm:$0xff]
    %v562 = vld [vmem:[%s5 + $0x80] sm:$0xff]
    %v563 = vld [vmem:[%s5 + $0x88] sm:$0xff]
    %v564 = vld [vmem:[%s5 + $0x90] sm:$0xff]
    %v565 = vld [vmem:[%s5 + $0x98] sm:$0xff]
    %v566 = vld [vmem:[%s5 + $0xa0] sm:$0xff]
    %v567 = vld [vmem:[%s5 + $0xa8] sm:$0xff]
    %v568 = vld [vmem:[%s5 + $0xb0] sm:$0xff]
    %v569 = vld [vmem:[%s5 + $0xb8] sm:$0xff]
    %v570 = vld [vmem:[%s5 + $0xc0] sm:$0xff]
    %v571 = vld [vmem:[%s5 + $0xc8] sm:$0xff]
    %v572 = vld [vmem:[%s5 + $0xd0] sm:$0xff]
    %v573 = vld [vmem:[%s5 + $0xd8] sm:$0xff]
    %v574 = vld [vmem:[%s5 + $0xe0] sm:$0xff]
    %v575 = vld [vmem:[%s5 + $0xe8] sm:$0xff]
    %v576 = vld [vmem:[%s5 + $0xf0] sm:$0xff]
    %v577 = vld [vmem:[%s5 + $0xf8] sm:$0xff]
    %v578 = vpack.c.bf16 %v547, %v546
    %v579 = vpack.c.bf16 %v549, %v548
    %v580 = vpack.c.bf16 %v551, %v550
    %v581 = vpack.c.bf16 %v553, %v552
    %v582 = vpack.c.bf16 %v555, %v554
    %v583 = vpack.c.bf16 %v557, %v556
    %v584 = vpack.c.bf16 %v559, %v558
    %v585 = vpack.c.bf16 %v561, %v560
    %v586 = vpack.c.bf16 %v563, %v562
    %v587 = vpack.c.bf16 %v565, %v564
    %v588 = vpack.c.bf16 %v567, %v566
    %v589 = vpack.c.bf16 %v569, %v568
    %v590 = vpack.c.bf16 %v571, %v570
    %v591 = vpack.c.bf16 %v573, %v572
    %v592 = vpack.c.bf16 %v575, %v574
    %v593 = vpack.c.bf16 %v577, %v576
    %v594 = vld [vmem:[%s6] sm:$0x1]
    %v596 = vlaneseq
    %v597 = vshrl.u32 %v596, 7
    %v598 = vsub.s32 0, %v597
    %v599 = vrot.slane %v594, %v598
    %601 = vmatprep.subr.bf16.mxu0 0
    %602 = vmatpush1.bf16.msra.mxu0 %v578
    %603 = vmatprep.subr.bf16.mxu0 0
    %604 = vmatpush1.bf16.msra.mxu0 %v579
    %605 = vmatprep.subr.bf16.mxu0 0
    %606 = vmatpush1.bf16.msra.mxu0 %v580
    %607 = vmatprep.subr.bf16.mxu0 0
    %608 = vmatpush1.bf16.msra.mxu0 %v581
    %609 = vmatprep.subr.bf16.mxu0 0
    %610 = vmatpush1.bf16.msra.mxu0 %v582
    %611 = vmatprep.subr.bf16.mxu0 0
    %612 = vmatpush1.bf16.msra.mxu0 %v583
    %613 = vmatprep.subr.bf16.mxu0 0
    %614 = vmatpush1.bf16.msra.mxu0 %v584
    %615 = vmatprep.subr.bf16.mxu0 0
    %616 = vmatpush1.bf16.msra.mxu0 %v585
    %617 = vmatprep.subr.bf16.mxu0 0
    %618 = vmatpush1.bf16.msra.mxu0 %v586
    %619 = vmatprep.subr.bf16.mxu0 0
    %620 = vmatpush1.bf16.msra.mxu0 %v587
    %621 = vmatprep.subr.bf16.mxu0 0
    %622 = vmatpush1.bf16.msra.mxu0 %v588
    %623 = vmatprep.subr.bf16.mxu0 0
    %624 = vmatpush1.bf16.msra.mxu0 %v589
    %625 = vmatprep.subr.bf16.mxu0 0
    %626 = vmatpush1.bf16.msra.mxu0 %v590
    %627 = vmatprep.subr.bf16.mxu0 0
    %628 = vmatpush1.bf16.msra.mxu0 %v591
    %629 = vmatprep.subr.bf16.mxu0 0
    %630 = vmatpush1.bf16.msra.mxu0 %v592
    %631 = vmatprep.subr.bf16.mxu0 0
    %632 = vmatpush1.bf16.msra.mxu0 %v593
    %633 = vmatprep.mubr.bf16.mxu0 %v545
    %634 = vmatmul.mubr.bf16.gmra.mrb[0].mxu0 %v544
    %v635 = vpop.f32.mrb[0].mxu0
    %v636 = vadd.f32 %v599, %v635
    %v637 = vpop.f32.mrb[0].mxu0
    %v638 = vpop.f32.mrb[0].mxu0
    %v639 = vpop.f32.mrb[0].mxu0
    %640 = vdwg.mxu0
    %vm641 = vcmask 25600
    %v642 = vsel %vm641, %v636, -inf
    %643 = vmax.xlane.f32.xlu0 %v642
    %v644 = vpop.xlane.xlu0 %643
    %v645 = vsub.f32 %v636, %v644
    %v646 = vmul.f32 %v645, 1.442695
    %v647 = vpow.pop %v646
    %v648 = vsel %vm641, %v647, 0.0
    %649 = vadd.xlane.f32.xlu0 %v648
    %v650 = vpop.xlane.xlu0 %649
    %v651 = vrcp.pop %v650
    %v652 = vmul.f32 %v647, %v651
    %653 = vst.msk [vmem:[#allocation7] sm:$0x3] %vm641, %v652
    // Predicated region
    $region38: #{tpu_custom_call.1} parent=1 // pred_check
      _
    $region39: #{tpu_custom_call.1} parent=1 // pred_check_branch
      %655 = sbr.rel (0) target = $region41
    $region40: #{tpu_custom_call.1} parent=1 // pred_region
      %s657 = ssub.s32 32, 32
      %658 = vsyncadd [#allocation4], %s657
      %s660 = sshll.u32 [#allocation7], 4
      %s661 = int_to_ptr.vmem [resolvable:$true] %s660
      %663 = dma.vmem_to_hbm [thread:$0]  %s661, 32, %s7, [#allocation4]
    $region41: #{tpu_custom_call.1} parent=1 // pred_fallthru
      _
    // Predicated region
    $region42: #{tpu_custom_call.1} parent=1 // pred_check
      _
    $region43: #{tpu_custom_call.1} parent=1 // pred_check_branch
      %665 = sbr.rel (0) target = $region45
    $region44: #{tpu_custom_call.1} parent=1 // pred_region
      %666 = dma.done [#allocation4], 32
    $region45: #{tpu_custom_call.1} parent=1 // pred_fallthru
      _
    %667 = vsyncpa [#allocation3], 1
    %668 = vsyncpa [#allocation6], 1
    %669 = vsyncpa [#allocation4], 1

</llo_original>
